<compile_context>
chip_gen: v6e
topology: v6e:2x2x1
jax: 0.10.0
libtpu: 0.0.40
codegen_flags: <defaults>
</compile_context>

<pallas_src>
import functools

import jax
import jax.numpy as jnp
import numpy as np
from jax.experimental import pallas as pl
from jax.experimental.pallas import tpu as pltpu


def _round_up(x, m):
    return (x + m - 1) // m * m


def _lora_linear_kernel(x_ref, wt_ref, b_ref, xr_ref, l_ref, o_ref, acc_ref):
    """One (tm, tn) output tile, reduced over the K grid axis.

    acc_ref : (tm, tn) f32 accumulator for x @ W^T.
    xr_ref  : (tm, r_pad) precomputed (x @ R) in compute dtype (hoisted).
    l_ref   : (r_pad, tn) lora_left with lora_scaling already folded in.
    """
    k = pl.program_id(2)

    @pl.when(k == 0)
    def _():
        acc_ref[...] = jnp.zeros_like(acc_ref)

    acc_ref[...] += jnp.dot(x_ref[...], wt_ref[...],
                            preferred_element_type=jnp.float32)

    @pl.when(k == pl.num_programs(2) - 1)
    def _():
        # Rank-r LoRA matmul once per (i, j) tile; scaling is pre-folded into L.
        lora = jnp.dot(xr_ref[...], l_ref[...],
                       preferred_element_type=jnp.float32)
        out = acc_ref[...] + lora + b_ref[...].astype(jnp.float32)
        o_ref[...] = out.astype(o_ref.dtype)


def prepare_lora_params(weight, bias, lora_right, lora_left, lora_scaling=1.0,
                        *, tn=512, tk=1024, compute_dtype=jnp.bfloat16):
    """One-time preprocessing of the frozen / LoRA parameters.

    Transposes W once, casts everything to the bf16 compute dtype, pads K/N to
    tile multiples and lora_dim to 128 lanes, and folds
    `lora_scaling / lora_dim` into L.
    """
    out_features, in_features = weight.shape
    lora_dim = lora_right.shape[1]
    scaling = float(lora_scaling) / float(lora_dim)

    # Shrink tiles for small problems while keeping (8,128) alignment.
    tk = min(tk, _round_up(in_features, 128))
    tn = min(tn, _round_up(out_features, 128))
    k_pad = _round_up(in_features, tk)
    n_pad = _round_up(out_features, tn)
    r_pad = _round_up(lora_dim, 128)

    wt = jnp.zeros((k_pad, n_pad), compute_dtype)
    wt = wt.at[:in_features, :out_features].set(weight.T.astype(compute_dtype))

    b2d = jnp.zeros((1, n_pad), jnp.float32)
    if bias is not None:
        b2d = b2d.at[0, :out_features].set(bias.astype(jnp.float32))

    # R is only used by the wrapper-side rank-r projection -> no K padding.
    r = jnp.zeros((in_features, r_pad), compute_dtype)
    r = r.at[:, :lora_dim].set(lora_right.astype(compute_dtype))

    # Fold the static scalar scaling into L once (free at runtime).
    l = jnp.zeros((r_pad, n_pad), compute_dtype)
    l = l.at[:lora_dim, :out_features].set(
        (lora_left * scaling).astype(compute_dtype))

    return dict(
        wt=wt, bias=b2d, r=r, l=l,
        in_features=in_features, out_features=out_features,
        tk=tk, tn=tn, r_pad=r_pad, compute_dtype=compute_dtype)


def lora_linear(x, params, *, tm=512):
    """Pallas LinearLayer_LoRA.forward (fuse_lora=False): x (..., in_features)."""
    orig_shape = x.shape
    in_features = params["in_features"]
    out_features = params["out_features"]
    tk, tn, r_pad = params["tk"], params["tn"], params["r_pad"]
    compute_dtype = params["compute_dtype"]
    wt, b2d, r, l = params["wt"], params["bias"], params["r"], params["l"]
    k_pad, n_pad = wt.shape

    x2d = x.reshape(-1, in_features)                 # (M, K)
    m = x2d.shape[0]
    # bf16 packs 2 rows/sublane -> keep tm a multiple of 16 for small M.
    tm = min(tm, _round_up(m, 16))
    m_pad = _round_up(m, tm)

    x_c = x2d.astype(compute_dtype)

    # Hoisted rank-r projection: computed ONCE per call (not once per N tile).
    # TODO(synk): apply dropout to x_c here when lora_dropout > 0 in training.
    xr = jnp.dot(x_c, r, preferred_element_type=jnp.float32)
    xr = xr.astype(compute_dtype)

    # Zero-pad only when actually needed (avoid extra HBM round trips).
    if m_pad != m or k_pad != in_features:
        x_c = jnp.pad(x_c, ((0, m_pad - m), (0, k_pad - in_features)))
    if m_pad != m:
        xr = jnp.pad(xr, ((0, m_pad - m), (0, 0)))

    # Megacore: if M fits one i tile, keep >=2 j tiles for the second core.
    tn_eff = tn
    if m_pad // tm < 2:
        while (n_pad // tn_eff < 2 and tn_eff % 256 == 0
               and n_pad % (tn_eff // 2) == 0):
            tn_eff //= 2

    grid = (m_pad // tm, n_pad // tn_eff, k_pad // tk)

    cd_size = jnp.dtype(compute_dtype).itemsize
    out_itemsize = jnp.dtype(x.dtype).itemsize
    n_i, n_j = grid[0], grid[1]
    flops = 2 * m_pad * n_pad * k_pad + 2 * m_pad * r_pad * n_pad
    bytes_accessed = int(
        m_pad * k_pad * cd_size * n_j          # x re-streamed per j tile
        + k_pad * n_pad * cd_size * n_i        # W^T re-streamed per i tile
        + m_pad * r_pad * cd_size * n_j        # xr per (i, j)
        + r_pad * n_pad * cd_size * n_i        # L per (i, j)
        + n_pad * 4 * n_i                      # bias
        + m_pad * n_pad * out_itemsize)        # output writeback

    out2d = pl.pallas_call(
        _lora_linear_kernel,
        out_shape=jax.ShapeDtypeStruct((m_pad, n_pad), x.dtype),
        grid_spec=pltpu.PrefetchScalarGridSpec(
            num_scalar_prefetch=0,
            grid=grid,
            in_specs=[
                pl.BlockSpec((tm, tk), lambda i, j, k: (i, k)),        # x
                pl.BlockSpec((tk, tn_eff), lambda i, j, k: (k, j)),    # W^T
                pl.BlockSpec((1, tn_eff), lambda i, j, k: (0, j)),     # bias
                pl.BlockSpec((tm, r_pad), lambda i, j, k: (i, 0)),     # x @ R
                pl.BlockSpec((r_pad, tn_eff), lambda i, j, k: (0, j)), # L*scale
            ],
            out_specs=pl.BlockSpec((tm, tn_eff), lambda i, j, k: (i, j)),
            scratch_shapes=[
                pltpu.VMEM((tm, tn_eff), jnp.float32),  # base accumulator
            ],
        ),
        compiler_params=pltpu.CompilerParams(
            dimension_semantics=("parallel", "parallel", "arbitrary"),
            vmem_limit_bytes=32 * 1024 * 1024,
        ),
        cost_estimate=pl.CostEstimate(
            flops=flops, transcendentals=0, bytes_accessed=bytes_accessed),
    )(x_c, wt, b2d, xr, l)

    out2d = out2d[:m, :out_features]
    return out2d.reshape(*orig_shape[:-1], out_features)


if __name__ == "__main__":
    key = jax.random.PRNGKey(0)
    batch, seq, in_features, out_features, lora_dim = 2, 8, 32, 32, 4
    lora_scaling_arg = 1.0

    k_w, k_b, k_r, k_l, k_x = jax.random.split(key, 5)
    # Base weight / bias of the wrapped frozen linear layer.
    weight = jax.random.normal(k_w, (out_features, in_features), jnp.float32) * 0.02
    bias = jax.random.normal(k_b, (out_features,), jnp.float32) * 0.02
    # lora_right_weight: kaiming_uniform_(a=sqrt(5)) -> bound = 1/sqrt(lora_dim).
    bound = 1.0 / np.sqrt(lora_dim)
    lora_right = jax.random.uniform(
        k_r, (in_features, lora_dim), jnp.float32, minval=-bound, maxval=bound)
    # reset_parameters() zeros lora_left; use a small nonzero value here so the
    # LoRA branch contributes and gets validated numerically.
    lora_left = jax.random.normal(k_l, (lora_dim, out_features), jnp.float32) * 0.05

    x = jax.random.normal(k_x, (batch, seq, in_features), jnp.float32)

    params = prepare_lora_params(
        weight, bias, lora_right, lora_left, lora_scaling=lora_scaling_arg)
    out = lora_linear(x, params)
    out = jax.block_until_ready(out)

    # Pure-JAX reference of the forward semantics (f32).
    scaling = lora_scaling_arg / lora_dim
    x2d = x.reshape(-1, in_features)
    ref = (x2d @ weight.T + bias
           + (x2d @ lora_right @ lora_left) * scaling
           ).reshape(batch, seq, out_features)
    # bf16 compute path -> relaxed tolerance.
    np.testing.assert_allclose(np.asarray(out), np.asarray(ref),
                               rtol=3e-2, atol=2e-2)

    print("KERNEL_OK")
</pallas_src>

<mosaic_0001>
module attributes {stable_mosaic.version = 11 : i64} {
  func.func @_lora_linear_kernel(%arg0: i32, %arg1: i32, %arg2: i32, %arg3: memref<16x128xbf16, #tpu.memory_space<vmem>>, %arg4: memref<128x128xbf16, #tpu.memory_space<vmem>>, %arg5: memref<1x128xf32, #tpu.memory_space<vmem>>, %arg6: memref<16x128xbf16, #tpu.memory_space<vmem>>, %arg7: memref<128x128xbf16, #tpu.memory_space<vmem>>, %arg8: memref<16x128xf32, #tpu.memory_space<vmem>>, %arg9: memref<16x128xf32, #tpu.memory_space<vmem>>) attributes {dimension_semantics = [#tpu.dimension_semantics<parallel>, #tpu.dimension_semantics<parallel>, #tpu.dimension_semantics<arbitrary>], iteration_bounds = array<i64: 1, 1, 1>, scalar_prefetch = 0 : i64, scratch_operands = 1 : i64, tpu.core_type = #tpu.core_type<tc>, window_params = [{transform_indices = @transform_0, window_bounds = array<i64: 16, 128>}, {transform_indices = @transform_1, window_bounds = array<i64: 128, 128>}, {transform_indices = @transform_2, window_bounds = array<i64: 1, 128>}, {transform_indices = @transform_3, window_bounds = array<i64: 16, 128>}, {transform_indices = @transform_4, window_bounds = array<i64: 128, 128>}, {transform_indices = @transform_5, window_bounds = array<i64: 16, 128>}]} {
    %c0_i32 = arith.constant 0 : i32
    %0 = arith.cmpi eq, %arg2, %c0_i32 : i32
    %1 = arith.extui %0 : i1 to i32
    %c0_i32_0 = arith.constant 0 : i32
    %2 = arith.cmpi ne, %1, %c0_i32_0 : i32
    scf.if %2 {
      %cst_10 = arith.constant 0.000000e+00 : f32
      %12 = vector.broadcast %cst_10 : f32 to vector<16x128xf32>
      %c0_11 = arith.constant 0 : index
      %c0_12 = arith.constant 0 : index
      %13 = vector.load %arg9[%c0_11, %c0_12] : memref<16x128xf32, #tpu.memory_space<vmem>>, vector<16x128xf32>
      tpu.vector_store %arg9[%c0_11, %c0_12], %12 {strides = array<i32>} : memref<16x128xf32, #tpu.memory_space<vmem>>, vector<16x128xf32>,
    } else {
    }
    %c0 = arith.constant 0 : index
    %c0_1 = arith.constant 0 : index
    %3 = vector.load %arg9[%c0, %c0_1] : memref<16x128xf32, #tpu.memory_space<vmem>>, vector<16x128xf32>
    %c0_2 = arith.constant 0 : index
    %c0_3 = arith.constant 0 : index
    %4 = vector.load %arg3[%c0_2, %c0_3] : memref<16x128xbf16, #tpu.memory_space<vmem>>, vector<16x128xbf16>
    %c0_4 = arith.constant 0 : index
    %c0_5 = arith.constant 0 : index
    %5 = vector.load %arg4[%c0_4, %c0_5] : memref<128x128xbf16, #tpu.memory_space<vmem>>, vector<128x128xbf16>
    %cst = arith.constant dense<0.000000e+00> : vector<16x128xf32>
    %6 = tpu.matmul %4, %5, %cst {dimension_numbers = #tpu.dot_dimension_numbers<[1], [0], [0], [1], [0, 0, 1, 1], [], []>} : vector<16x128xbf16>, vector<128x128xbf16>, vector<16x128xf32> -> vector<16x128xf32>
    %7 = arith.addf %3, %6 : vector<16x128xf32>
    %c0_6 = arith.constant 0 : index
    %c0_7 = arith.constant 0 : index
    %8 = vector.load %arg9[%c0_6, %c0_7] : memref<16x128xf32, #tpu.memory_space<vmem>>, vector<16x128xf32>
    tpu.vector_store %arg9[%c0_6, %c0_7], %7 {strides = array<i32>} : memref<16x128xf32, #tpu.memory_space<vmem>>, vector<16x128xf32>,
    %c0_i32_8 = arith.constant 0 : i32
    %9 = arith.cmpi eq, %arg2, %c0_i32_8 : i32
    %10 = arith.extui %9 : i1 to i32
    %c0_i32_9 = arith.constant 0 : i32
    %11 = arith.cmpi ne, %10, %c0_i32_9 : i32
    scf.if %11 {
      %c0_10 = arith.constant 0 : index
      %c0_11 = arith.constant 0 : index
      %12 = vector.load %arg6[%c0_10, %c0_11] : memref<16x128xbf16, #tpu.memory_space<vmem>>, vector<16x128xbf16>
      %c0_12 = arith.constant 0 : index
      %c0_13 = arith.constant 0 : index
      %13 = vector.load %arg7[%c0_12, %c0_13] : memref<128x128xbf16, #tpu.memory_space<vmem>>, vector<128x128xbf16>
      %cst_14 = arith.constant dense<0.000000e+00> : vector<16x128xf32>
      %14 = tpu.matmul %12, %13, %cst_14 {dimension_numbers = #tpu.dot_dimension_numbers<[1], [0], [0], [1], [0, 0, 1, 1], [], []>} : vector<16x128xbf16>, vector<128x128xbf16>, vector<16x128xf32> -> vector<16x128xf32>
      %c0_15 = arith.constant 0 : index
      %c0_16 = arith.constant 0 : index
      %15 = vector.load %arg9[%c0_15, %c0_16] : memref<16x128xf32, #tpu.memory_space<vmem>>, vector<16x128xf32>
      %16 = arith.addf %15, %14 : vector<16x128xf32>
      %c0_17 = arith.constant 0 : index
      %c0_18 = arith.constant 0 : index
      %17 = vector.load %arg5[%c0_17, %c0_18] : memref<1x128xf32, #tpu.memory_space<vmem>>, vector<1x128xf32>
      %18 = vector.broadcast %17 : vector<1x128xf32> to vector<16x128xf32>
      %19 = arith.addf %16, %18 : vector<16x128xf32>
      %c0_19 = arith.constant 0 : index
      %c0_20 = arith.constant 0 : index
      %20 = vector.load %arg8[%c0_19, %c0_20] : memref<16x128xf32, #tpu.memory_space<vmem>>, vector<16x128xf32>
      tpu.vector_store %arg8[%c0_19, %c0_20], %19 {strides = array<i32>} : memref<16x128xf32, #tpu.memory_space<vmem>>, vector<16x128xf32>,
    } else {
    }
    return
  }
  func.func @transform_0(%arg0: i32, %arg1: i32, %arg2: i32) -> (i32, i32) {
    %c0_i32 = arith.constant 0 : i32
    return %arg0, %arg2 : i32, i32
  }
  func.func @transform_1(%arg0: i32, %arg1: i32, %arg2: i32) -> (i32, i32) {
    %c0_i32 = arith.constant 0 : i32
    return %arg2, %arg1 : i32, i32
  }
  func.func @transform_2(%arg0: i32, %arg1: i32, %arg2: i32) -> (i32, i32) {
    %c0_i32 = arith.constant 0 : i32
    %c0_i32_0 = arith.constant 0 : i32
    return %c0_i32, %arg1 : i32, i32
  }
  func.func @transform_3(%arg0: i32, %arg1: i32, %arg2: i32) -> (i32, i32) {
    %c0_i32 = arith.constant 0 : i32
    %c0_i32_0 = arith.constant 0 : i32
    return %arg0, %c0_i32 : i32, i32
  }
  func.func @transform_4(%arg0: i32, %arg1: i32, %arg2: i32) -> (i32, i32) {
    %c0_i32 = arith.constant 0 : i32
    %c0_i32_0 = arith.constant 0 : i32
    return %c0_i32, %arg1 : i32, i32
  }
  func.func @transform_5(%arg0: i32, %arg1: i32, %arg2: i32) -> (i32, i32) {
    %c0_i32 = arith.constant 0 : i32
    return %arg0, %arg1 : i32, i32
  }
}

</mosaic_0001>

<llo_original>
// kernel: tpu_custom_call.1
$region0: #{tpu_custom_call.1}
  #allocation0 [shape = 'u32[]', space=smem, size = 0x4, offset = 0x4, fixed_abs, tag = 'smem constant byte address 0x4 - core index']
  #allocation1 [shape = 'u32[144,128]{1,0:T(1,128)}', space=vmem, size = 0x12000, scoped, tag = 'internal scratch']
  #allocation2 [shape = 'f32[16,128]{1,0:T(8,128)}', space=vmem, size = 0x2000, scoped, tag = 'scratch operand']
  %s0 = inlined_call_operand.hbm [shape: bf16[16,128], index: 0, kind: input, shape index: {}]
  %s1 = inlined_call_operand.hbm [shape: bf16[128,128], index: 1, kind: input, shape index: {}]
  %s2 = inlined_call_operand.vmem [shape: f32[1,128], index: 2, kind: input, shape index: {}]
  %s3 = inlined_call_operand.hbm [shape: bf16[16,128], index: 3, kind: input, shape index: {}]
  %s4 = inlined_call_operand.hbm [shape: bf16[128,128], index: 4, kind: input, shape index: {}]
  %s5 = inlined_call_operand.hbm [shape: f32[16,128], index: 5, kind: output, shape index: {}]
  %s6 = sld [smem:[#allocation0]]
  $region54: #{tpu_custom_call.1} parent=0
    _
  %s8 = ssub.s32 1, %s6
  %s9 = scalar_select 0, %s8, %s6
  $region1: #{tpu_custom_call.1} parent=0
    #allocation3 [shape = 'u8[4096]{0}', space=vmem, size = 0x1000, scoped, tag = 'input window, operand 0, single buffered']
    #allocation4 [shape = 's32[1]{0}', space=sflag, size = 0x4, scoped, tag = 'scoped memory for tpu_custom_call.1']
    #allocation5 [shape = 's32[1]{0}', space=sflag, size = 0x4, scoped, tag = 'scoped memory for tpu_custom_call.1']
    #allocation6 [shape = 'u8[32768]{0}', space=vmem, size = 0x8000, scoped, tag = 'input window, operand 1, single buffered']
    #allocation7 [shape = 's32[1]{0}', space=sflag, size = 0x4, scoped, tag = 'scoped memory for tpu_custom_call.1']
    #allocation8 [shape = 'u8[4096]{0}', space=vmem, size = 0x1000, scoped, tag = 'input window, operand 3, single buffered']
    #allocation9 [shape = 'u8[32768]{0}', space=vmem, size = 0x8000, scoped, tag = 'input window, operand 4, single buffered']
    #allocation10 [shape = 's32[1]{0}', space=sflag, size = 0x4, scoped, tag = 'scoped memory for tpu_custom_call.1']
    #allocation11 [shape = 'u8[8192]{0}', space=vmem, size = 0x2000, scoped, tag = 'output window, operand 0, single buffered']
    %10 = vsyncpa [#allocation4], 0
    %11 = vsyncpa [#allocation7], 0
    %12 = vsyncpa [#allocation10], 0
    %13 = vsyncpa [#allocation5], 0
    // Predicated region
    $region2: #{tpu_custom_call.1} parent=1 // pred_check
      _
    $region3: #{tpu_custom_call.1} parent=1 // pred_check_branch
      %15 = sbr.rel (0) target = $region5
    $region4: #{tpu_custom_call.1} parent=1 // pred_region
      %s17 = ssub.s32 128, 128
      %18 = vsyncadd [#allocation4], %s17
      %s19 = sshll.u32 [#allocation3], 4
      %s20 = int_to_ptr.vmem [resolvable:$true] %s19
      %25 = dma.hbm_to_vmem [thread:$0]  %s0, 128, %s20, [#allocation4], 64, 64, 4
    $region5: #{tpu_custom_call.1} parent=1 // pred_fallthru
      _
    // Predicated region
    $region6: #{tpu_custom_call.1} parent=1 // pred_check
      _
    $region7: #{tpu_custom_call.1} parent=1 // pred_check_branch
      %27 = sbr.rel (0) target = $region9
    $region8: #{tpu_custom_call.1} parent=1 // pred_region
      %s29 = ssub.s32 1024, 1024
      %30 = vsyncadd [#allocation7], %s29
      %s31 = sshll.u32 [#allocation6], 4
      %s32 = int_to_ptr.vmem [resolvable:$true] %s31
      %37 = dma.hbm_to_vmem [thread:$0]  %s1, 1024, %s32, [#allocation7], 64, 64, 4
    $region9: #{tpu_custom_call.1} parent=1 // pred_fallthru
      _
    // Predicated region
    $region10: #{tpu_custom_call.1} parent=1 // pred_check
      _
    $region11: #{tpu_custom_call.1} parent=1 // pred_check_branch
      %39 = sbr.rel (0) target = $region13
    $region12: #{tpu_custom_call.1} parent=1 // pred_region
      _
    $region13: #{tpu_custom_call.1} parent=1 // pred_fallthru
      _
    // Predicated region
    $region14: #{tpu_custom_call.1} parent=1 // pred_check
      _
    $region15: #{tpu_custom_call.1} parent=1 // pred_check_branch
      %41 = sbr.rel (0) target = $region17
    $region16: #{tpu_custom_call.1} parent=1 // pred_region
      %s43 = ssub.s32 128, 128
      %44 = vsyncadd [#allocation7], %s43
      %s45 = sshll.u32 [#allocation8], 4
      %s46 = int_to_ptr.vmem [resolvable:$true] %s45
      %51 = dma.hbm_to_vmem [thread:$0]  %s3, 128, %s46, [#allocation7], 64, 64, 4
    $region17: #{tpu_custom_call.1} parent=1 // pred_fallthru
      _
    // Predicated region
    $region18: #{tpu_custom_call.1} parent=1 // pred_check
      _
    $region19: #{tpu_custom_call.1} parent=1 // pred_check_branch
      %53 = sbr.rel (0) target = $region21
    $region20: #{tpu_custom_call.1} parent=1 // pred_region
      %s55 = ssub.s32 1024, 1024
      %56 = vsyncadd [#allocation10], %s55
      %s57 = sshll.u32 [#allocation9], 4
      %s58 = int_to_ptr.vmem [resolvable:$true] %s57
      %63 = dma.hbm_to_vmem [thread:$0]  %s4, 1024, %s58, [#allocation10], 64, 64, 4
    $region21: #{tpu_custom_call.1} parent=1 // pred_fallthru
      _
    // Predicated region
    $region22: #{tpu_custom_call.1} parent=1 // pred_check
      _
    $region23: #{tpu_custom_call.1} parent=1 // pred_check_branch
      %65 = sbr.rel (0) target = $region25
    $region24: #{tpu_custom_call.1} parent=1 // pred_region
      %66 = dma.done [#allocation4], 128
    $region25: #{tpu_custom_call.1} parent=1 // pred_fallthru
      _
    // Predicated region
    $region26: #{tpu_custom_call.1} parent=1 // pred_check
      _
    $region27: #{tpu_custom_call.1} parent=1 // pred_check_branch
      %68 = sbr.rel (0) target = $region29
    $region28: #{tpu_custom_call.1} parent=1 // pred_region
      %69 = dma.done [#allocation7], 1024
    $region29: #{tpu_custom_call.1} parent=1 // pred_fallthru
      _
    // Predicated region
    $region30: #{tpu_custom_call.1} parent=1 // pred_check
      _
    $region31: #{tpu_custom_call.1} parent=1 // pred_check_branch
      %71 = sbr.rel (0) target = $region33
    $region32: #{tpu_custom_call.1} parent=1 // pred_region
      %72 = dma.done [#allocation7], 128
    $region33: #{tpu_custom_call.1} parent=1 // pred_fallthru
      _
    // Predicated region
    $region34: #{tpu_custom_call.1} parent=1 // pred_check
      _
    $region35: #{tpu_custom_call.1} parent=1 // pred_check_branch
      %74 = sbr.rel (0) target = $region37
    $region36: #{tpu_custom_call.1} parent=1 // pred_region
      %75 = dma.done [#allocation10], 1024
    $region37: #{tpu_custom_call.1} parent=1 // pred_fallthru
      _
    %p77 = scmp.eq.s32.totalorder 0, 0
    // Predicated region
    $region38: #{tpu_custom_call.1} parent=1 // pred_check
      %p78 = pneg %p77
    $region39: #{tpu_custom_call.1} parent=1 // pred_check_branch
      %80 = sbr.rel (%p78) target = $region41
    $region40: #{tpu_custom_call.1} parent=1 // pred_region
      %81 = vst [vmem:[#allocation2] sm:$0xff] 0.0
      %82 = vst [vmem:[#allocation2 + $0x8] sm:$0xff] 0.0
    $region41: #{tpu_custom_call.1} parent=1 // pred_fallthru
      _
    %v83 = vld [vmem:[#allocation2] sm:$0xff]
    %v84 = vld [vmem:[#allocation2 + $0x8] sm:$0xff]
    %v85 = vld [vmem:[#allocation3] sm:$0xf]
    %v86 = vld [vmem:[#allocation3 + $0x4] sm:$0xf]
    %v87 = vld [vmem:[#allocation6] sm:$0xf]
    %v88 = vld [vmem:[#allocation6 + $0x4] sm:$0xf]
    %v89 = vld [vmem:[#allocation6 + $0x8] sm:$0xf]
    %v90 = vld [vmem:[#allocation6 + $0xc] sm:$0xf]
    %v91 = vld [vmem:[#allocation6 + $0x10] sm:$0xf]
    %v92 = vld [vmem:[#allocation6 + $0x14] sm:$0xf]
    %v93 = vld [vmem:[#allocation6 + $0x18] sm:$0xf]
    %v94 = vld [vmem:[#allocation6 + $0x1c] sm:$0xf]
    %v95 = vld [vmem:[#allocation6 + $0x20] sm:$0xf]
    %v96 = vld [vmem:[#allocation6 + $0x24] sm:$0xf]
    %v97 = vld [vmem:[#allocation6 + $0x28] sm:$0xf]
    %v98 = vld [vmem:[#allocation6 + $0x2c] sm:$0xf]
    %v99 = vld [vmem:[#allocation6 + $0x30] sm:$0xf]
    %v100 = vld [vmem:[#allocation6 + $0x34] sm:$0xf]
    %v101 = vld [vmem:[#allocation6 + $0x38] sm:$0xf]
    %v102 = vld [vmem:[#allocation6 + $0x3c] sm:$0xf]
    %v105 = vunpack.c.l.b16 %v85
    %v106 = vunpack.c.l.b16 %v86
    %v107 = vpack.c.b16 %v106, %v105
    %v125 = vunpack.c.l.b16 %v87
    %v126 = vunpack.c.l.b16 %v88
    %v127 = vunpack.c.l.b16 %v89
    %v128 = vunpack.c.l.b16 %v90
    %v129 = vunpack.c.l.b16 %v91
    %v130 = vunpack.c.l.b16 %v92
    %v131 = vunpack.c.l.b16 %v93
    %v132 = vunpack.c.l.b16 %v94
    %v133 = vunpack.c.l.b16 %v95
    %v134 = vunpack.c.l.b16 %v96
    %v135 = vunpack.c.l.b16 %v97
    %v136 = vunpack.c.l.b16 %v98
    %v137 = vunpack.c.l.b16 %v99
    %v138 = vunpack.c.l.b16 %v100
    %v139 = vunpack.c.l.b16 %v101
    %v140 = vunpack.c.l.b16 %v102
    %v141 = vpack.c.b16 %v126, %v125
    %v142 = vpack.c.b16 %v128, %v127
    %v143 = vpack.c.b16 %v130, %v129
    %v144 = vpack.c.b16 %v132, %v131
    %v145 = vpack.c.b16 %v134, %v133
    %v146 = vpack.c.b16 %v136, %v135
    %v147 = vpack.c.b16 %v138, %v137
    %v148 = vpack.c.b16 %v140, %v139
    %157 = vmatprep.subr.bf16.mxu0 0
    %158 = vmatpush1.bf16.msra.mxu0 %v148
    %159 = vmatprep.subr.bf16.mxu0 0
    %160 = vmatpush1.bf16.msra.mxu0 %v147
    %161 = vmatprep.subr.bf16.mxu0 0
    %162 = vmatpush1.bf16.msra.mxu0 %v146
    %163 = vmatprep.subr.bf16.mxu0 0
    %164 = vmatpush1.bf16.msra.mxu0 %v145
    %165 = vmatprep.subr.bf16.mxu0 0
    %166 = vmatpush1.bf16.msra.mxu0 %v144
    %167 = vmatprep.subr.bf16.mxu0 0
    %168 = vmatpush1.bf16.msra.mxu0 %v143
    %169 = vmatprep.subr.bf16.mxu0 0
    %170 = vmatpush1.bf16.msra.mxu0 %v142
    %171 = vmatprep.subr.bf16.mxu0 0
    %172 = vmatpush1.bf16.msra.mxu0 %v141
    %173 = vmatprep.subr.bf16.mxu0 0
    %174 = vmatpush2.bf16.msra.mxu0 0
    %175 = vmatprep.subr.bf16.mxu0 0
    %176 = vmatpush2.bf16.msra.mxu0 0
    %177 = vmatprep.subr.bf16.mxu0 0
    %178 = vmatpush2.bf16.msra.mxu0 0
    %179 = vmatprep.subr.bf16.mxu0 0
    %180 = vmatpush2.bf16.msra.mxu0 0
    %181 = vmatprep.subr.bf16.mxu0 0
    %182 = vmatpush2.bf16.msra.mxu0 0
    %183 = vmatprep.subr.bf16.mxu0 0
    %184 = vmatpush2.bf16.msra.mxu0 0
    %185 = vmatprep.subr.bf16.mxu0 0
    %186 = vmatpush2.bf16.msra.mxu0 0
    %187 = vmatprep.subr.bf16.mxu0 0
    %188 = vmatpush2.bf16.msra.mxu0 0
    %189 = vmatprep.mubr.bf16.mxu0 0
    %190 = vmatmul.mubr.bf16.gmra.mxu0 %v107
    %v191 = vpop.f32.mrf.mxu0
    %v192 = vadd.f32 0.0, %v191
    %v193 = vpop.f32.mrf.mxu0
    %v194 = vpop.f32.mrf.mxu0
    %v195 = vadd.f32 0.0, %v194
    %v196 = vpop.f32.mrf.mxu0
    %197 = vdwg.mxu0
    %v198 = vadd.f32 %v83, %v192
    %v199 = vadd.f32 %v84, %v195
    %200 = vst [vmem:[#allocation2] sm:$0xff] %v198
    %201 = vst [vmem:[#allocation2 + $0x8] sm:$0xff] %v199
    // Predicated region
    $region42: #{tpu_custom_call.1} parent=1 // pred_check
      %p202 = pneg %p77
    $region43: #{tpu_custom_call.1} parent=1 // pred_check_branch
      %204 = sbr.rel (%p202) target = $region45
    $region44: #{tpu_custom_call.1} parent=1 // pred_region
      %v205 = vld [vmem:[#allocation8] sm:$0xf]
      %v206 = vld [vmem:[#allocation8 + $0x4] sm:$0xf]
      %v207 = vld [vmem:[#allocation9] sm:$0xf]
      %v208 = vld [vmem:[#allocation9 + $0x4] sm:$0xf]
      %v209 = vld [vmem:[#allocation9 + $0x8] sm:$0xf]
      %v210 = vld [vmem:[#allocation9 + $0xc] sm:$0xf]
      %v211 = vld [vmem:[#allocation9 + $0x10] sm:$0xf]
      %v212 = vld [vmem:[#allocation9 + $0x14] sm:$0xf]
      %v213 = vld [vmem:[#allocation9 + $0x18] sm:$0xf]
      %v214 = vld [vmem:[#allocation9 + $0x1c] sm:$0xf]
      %v215 = vld [vmem:[#allocation9 + $0x20] sm:$0xf]
      %v216 = vld [vmem:[#allocation9 + $0x24] sm:$0xf]
      %v217 = vld [vmem:[#allocation9 + $0x28] sm:$0xf]
      %v218 = vld [vmem:[#allocation9 + $0x2c] sm:$0xf]
      %v219 = vld [vmem:[#allocation9 + $0x30] sm:$0xf]
      %v220 = vld [vmem:[#allocation9 + $0x34] sm:$0xf]
      %v221 = vld [vmem:[#allocation9 + $0x38] sm:$0xf]
      %v222 = vld [vmem:[#allocation9 + $0x3c] sm:$0xf]
      %v225 = vunpack.c.l.b16 %v205
      %v226 = vunpack.c.l.b16 %v206
      %v227 = vpack.c.b16 %v226, %v225
      %v245 = vunpack.c.l.b16 %v207
      %v246 = vunpack.c.l.b16 %v208
      %v247 = vunpack.c.l.b16 %v209
      %v248 = vunpack.c.l.b16 %v210
      %v249 = vunpack.c.l.b16 %v211
      %v250 = vunpack.c.l.b16 %v212
      %v251 = vunpack.c.l.b16 %v213
      %v252 = vunpack.c.l.b16 %v214
      %v253 = vunpack.c.l.b16 %v215
      %v254 = vunpack.c.l.b16 %v216
      %v255 = vunpack.c.l.b16 %v217
      %v256 = vunpack.c.l.b16 %v218
      %v257 = vunpack.c.l.b16 %v219
      %v258 = vunpack.c.l.b16 %v220
      %v259 = vunpack.c.l.b16 %v221
      %v260 = vunpack.c.l.b16 %v222
      %v261 = vpack.c.b16 %v246, %v245
      %v262 = vpack.c.b16 %v248, %v247
      %v263 = vpack.c.b16 %v250, %v249
      %v264 = vpack.c.b16 %v252, %v251
      %v265 = vpack.c.b16 %v254, %v253
      %v266 = vpack.c.b16 %v256, %v255
      %v267 = vpack.c.b16 %v258, %v257
      %v268 = vpack.c.b16 %v260, %v259
      %277 = vmatprep.subr.bf16.mxu0 0
      %278 = vmatpush1.bf16.msra.mxu0 %v268
      %279 = vmatprep.subr.bf16.mxu0 0
      %280 = vmatpush1.bf16.msra.mxu0 %v267
      %281 = vmatprep.subr.bf16.mxu0 0
      %282 = vmatpush1.bf16.msra.mxu0 %v266
      %283 = vmatprep.subr.bf16.mxu0 0
      %284 = vmatpush1.bf16.msra.mxu0 %v265
      %285 = vmatprep.subr.bf16.mxu0 0
      %286 = vmatpush1.bf16.msra.mxu0 %v264
      %287 = vmatprep.subr.bf16.mxu0 0
      %288 = vmatpush1.bf16.msra.mxu0 %v263
      %289 = vmatprep.subr.bf16.mxu0 0
      %290 = vmatpush1.bf16.msra.mxu0 %v262
      %291 = vmatprep.subr.bf16.mxu0 0
      %292 = vmatpush1.bf16.msra.mxu0 %v261
      %293 = vmatprep.subr.bf16.mxu0 0
      %294 = vmatpush2.bf16.msra.mxu0 0
      %295 = vmatprep.subr.bf16.mxu0 0
      %296 = vmatpush2.bf16.msra.mxu0 0
      %297 = vmatprep.subr.bf16.mxu0 0
      %298 = vmatpush2.bf16.msra.mxu0 0
      %299 = vmatprep.subr.bf16.mxu0 0
      %300 = vmatpush2.bf16.msra.mxu0 0
      %301 = vmatprep.subr.bf16.mxu0 0
      %302 = vmatpush2.bf16.msra.mxu0 0
      %303 = vmatprep.subr.bf16.mxu0 0
      %304 = vmatpush2.bf16.msra.mxu0 0
      %305 = vmatprep.subr.bf16.mxu0 0
      %306 = vmatpush2.bf16.msra.mxu0 0
      %307 = vmatprep.subr.bf16.mxu0 0
      %308 = vmatpush2.bf16.msra.mxu0 0
      %309 = vmatprep.mubr.bf16.mxu0 0
      %310 = vmatmul.mubr.bf16.gmra.mxu0 %v227
      %v311 = vpop.f32.mrf.mxu0
      %v312 = vadd.f32 0.0, %v311
      %v313 = vpop.f32.mrf.mxu0
      %v314 = vpop.f32.mrf.mxu0
      %v315 = vadd.f32 0.0, %v314
      %v316 = vpop.f32.mrf.mxu0
      %317 = vdwg.mxu0
      %v318 = vld [vmem:[#allocation2] sm:$0xff]
      %v319 = vld [vmem:[#allocation2 + $0x8] sm:$0xff]
      %v320 = vadd.f32 %v318, %v312
      %v321 = vadd.f32 %v319, %v315
      %v322 = vld [vmem:[%s2] sm:$0x1]
      %v324 = vlaneseq
      %v325 = vshrl.u32 %v324, 7
      %v326 = vsub.s32 0, %v325
      %v327 = vrot.slane %v322, %v326
      %v329 = vadd.f32 %v320, %v327
      %v330 = vadd.f32 %v321, %v327
      %331 = vst [vmem:[#allocation11] sm:$0xff] %v329
      %332 = vst [vmem:[#allocation11 + $0x8] sm:$0xff] %v330
    $region45: #{tpu_custom_call.1} parent=1 // pred_fallthru
      _
    // Predicated region
    $region46: #{tpu_custom_call.1} parent=1 // pred_check
      _
    $region47: #{tpu_custom_call.1} parent=1 // pred_check_branch
      %334 = sbr.rel (0) target = $region49
    $region48: #{tpu_custom_call.1} parent=1 // pred_region
      %s336 = ssub.s32 256, 256
      %337 = vsyncadd [#allocation5], %s336
      %s338 = sshll.u32 [#allocation11], 4
      %s339 = int_to_ptr.vmem [resolvable:$true] %s338
      %344 = dma.vmem_to_hbm [thread:$0]  %s339, 256, %s5, [#allocation5], 128, 128, 8
    $region49: #{tpu_custom_call.1} parent=1 // pred_fallthru
      _
    // Predicated region
    $region50: #{tpu_custom_call.1} parent=1 // pred_check
      _
    $region51: #{tpu_custom_call.1} parent=1 // pred_check_branch
      %346 = sbr.rel (0) target = $region53
    $region52: #{tpu_custom_call.1} parent=1 // pred_region
      %347 = dma.done [#allocation5], 256
    $region53: #{tpu_custom_call.1} parent=1 // pred_fallthru
      _
    %348 = vsyncpa [#allocation4], 1
    %349 = vsyncpa [#allocation7], 1
    %350 = vsyncpa [#allocation10], 1
    %351 = vsyncpa [#allocation5], 1

</llo_original>
